<compile_context>
chip_gen: v6e
topology: v6e:2x2x1
jax: 0.10.0
libtpu: 0.0.40
codegen_flags: <defaults>
</compile_context>

<pallas_src>
import jax
import jax.numpy as jnp
from jax.experimental import pallas as pl
from jax.experimental.pallas import tpu as pltpu


_BLOCK_B_MAX = 1024  # sweep 1024-2048; 1024 is safe for v5e's 16 MiB scoped VMEM


def _round_up(x, m):
    return ((x + m - 1) // m) * m


def critic_kernel(state_ref, action_ref,
                  w1_ref, shift1_ref,
                  w2s_ref, w2a_ref, b2_ref,
                  w3_ref, b3_ref,
                  out_ref):
    state_bf = state_ref[...].astype(jnp.bfloat16)
    action_bf = action_ref[...].astype(jnp.bfloat16)

    # --- input_layer + eval-mode BatchNorm folded into (w1', shift1') ---
    h = (jnp.dot(state_bf, w1_ref[...], preferred_element_type=jnp.float32)
         + shift1_ref[...])
    h = jnp.maximum(h, 0.0)

    # --- fc1 over cat([h, action], dim=1) as a split matmul, then relu ---
    z = (jnp.dot(h.astype(jnp.bfloat16), w2s_ref[...],
                 preferred_element_type=jnp.float32)
         + jnp.dot(action_bf, w2a_ref[...], preferred_element_type=jnp.float32)
         + b2_ref[...])
    z = jnp.maximum(z, 0.0)

    # --- dropout: eval-mode identity ---

    # --- output_layer (N=1): VPU multiply + XLU lane reduce, (block_b, 1) store ---
    out_ref[...] = jnp.sum(z * w3_ref[...], axis=-1, keepdims=True) + b3_ref[0]


@jax.jit
def critic_forward(state, action, params):
    B, S = state.shape
    A = action.shape[1]

    # Fold eval-mode BatchNorm (running stats) and b1 into the first layer.
    bn_scale = params["gamma"] * jax.lax.rsqrt(params["running_var"] + 1e-5)
    bn_shift = params["beta"] - params["running_mean"] * bn_scale
    w1f = (params["w1"] * bn_scale).astype(jnp.bfloat16)      # (S, H) bf16
    shift1 = params["b1"] * bn_scale + bn_shift               # (1, H) f32

    H = w1f.shape[1]
    HALF = params["w2s"].shape[1]

    # Batch tiling: big blocks to amortize per-grid-step overhead; no input pad.
    block_b = min(_BLOCK_B_MAX, _round_up(B, 8))
    grid = pl.cdiv(B, block_b)

    const2 = lambda i: (0, 0)
    out = pl.pallas_call(
        critic_kernel,
        out_shape=jax.ShapeDtypeStruct((B, 1), jnp.float32),
        grid=(grid,),
        in_specs=[
            pl.BlockSpec((block_b, S), lambda i: (i, 0)),       # state
            pl.BlockSpec((block_b, A), lambda i: (i, 0)),       # action
            pl.BlockSpec((S, H), const2),                       # w1' (bf16, BN-folded)
            pl.BlockSpec((1, H), const2),                       # shift1 (b1*scale+shift)
            pl.BlockSpec((H, HALF), const2),                    # w2s (bf16)
            pl.BlockSpec((A, HALF), const2),                    # w2a (bf16)
            pl.BlockSpec((1, HALF), const2),                    # b2
            pl.BlockSpec((1, HALF), const2),                    # w3 row (f32)
            pl.BlockSpec(memory_space=pltpu.MemorySpace.SMEM),  # b3 scalar
        ],
        out_specs=pl.BlockSpec((block_b, 1), lambda i: (i, 0)),
        compiler_params=pltpu.CompilerParams(dimension_semantics=("parallel",)),
    )(state, action,
      w1f, shift1,
      params["w2s"], params["w2a"], params["b2"],
      params["w3"], params["b3"])

    return out


def init_params(key, state_size, hidden_size, action_size):
    """Deterministic init mirroring Critic.__init__/reset_parameters shapes."""
    half = hidden_size // 2
    ks = jax.random.split(key, 7)

    # input_layer: torch weight (hidden, state) stored transposed (state, hidden).
    # Kept f32 so the BatchNorm fold happens before bf16 quantization.
    lim1 = 1.0 / jnp.sqrt(hidden_size)            # hidden_init uses weight.size()[0]
    w1 = jax.random.uniform(ks[0], (state_size, hidden_size), jnp.float32,
                            -lim1, lim1)
    b1 = jax.random.uniform(ks[1], (1, hidden_size), jnp.float32,
                            -1.0 / jnp.sqrt(state_size), 1.0 / jnp.sqrt(state_size))

    # batchnorm params (PyTorch defaults: gamma=1, beta=0, mean=0, var=1)
    gamma = jnp.ones((1, hidden_size), jnp.float32)
    beta = jnp.zeros((1, hidden_size), jnp.float32)
    running_mean = jnp.zeros((1, hidden_size), jnp.float32)
    running_var = jnp.ones((1, hidden_size), jnp.float32)

    # fc1: torch weight (half, hidden+action) split + transposed, bf16 for MXU
    lim2 = 1.0 / jnp.sqrt(half)
    w2s = jax.random.uniform(ks[2], (hidden_size, half), jnp.float32,
                             -lim2, lim2).astype(jnp.bfloat16)
    w2a = jax.random.uniform(ks[3], (action_size, half), jnp.float32,
                             -lim2, lim2).astype(jnp.bfloat16)
    fan_in2 = hidden_size + action_size
    b2 = jax.random.uniform(ks[4], (1, half), jnp.float32,
                            -1.0 / jnp.sqrt(fan_in2), 1.0 / jnp.sqrt(fan_in2))

    # output_layer: weight (1, half) row (lane reduce instead of N=1 matmul), f32
    w3 = jax.random.uniform(ks[5], (1, half), jnp.float32, -3e-3, 3e-3)
    b3 = jax.random.uniform(ks[6], (1,), jnp.float32,
                            -1.0 / jnp.sqrt(half), 1.0 / jnp.sqrt(half))

    return dict(w1=w1, b1=b1, gamma=gamma, beta=beta,
                running_mean=running_mean, running_var=running_var,
                w2s=w2s, w2a=w2a, b2=b2, w3=w3, b3=b3)


def reference_forward(state, action, p):
    """Pure-JAX eval-mode reference mirroring the kernel's folding/bf16 math."""
    scale = p["gamma"] * jax.lax.rsqrt(p["running_var"] + 1e-5)
    shift = p["beta"] - p["running_mean"] * scale
    w1f = (p["w1"] * scale).astype(jnp.bfloat16)
    shift1 = p["b1"] * scale + shift
    h = jnp.dot(state.astype(jnp.bfloat16), w1f,
                preferred_element_type=jnp.float32) + shift1
    h = jnp.maximum(h, 0.0)
    z = (jnp.dot(h.astype(jnp.bfloat16), p["w2s"], preferred_element_type=jnp.float32)
         + jnp.dot(action.astype(jnp.bfloat16), p["w2a"],
                   preferred_element_type=jnp.float32)
         + p["b2"])
    z = jnp.maximum(z, 0.0)
    return jnp.sum(z * p["w3"], axis=-1, keepdims=True) + p["b3"]


if __name__ == "__main__":
    B = 8
    state_size = 16
    hidden_size = 32
    action_size = 8

    key = jax.random.PRNGKey(0)
    k_state, k_action, k_params = jax.random.split(key, 3)

    state = jax.random.normal(k_state, (B, state_size), jnp.float32)
    action = jax.random.normal(k_action, (B, action_size), jnp.float32)
    params = init_params(k_params, state_size, hidden_size, action_size)

    q = critic_forward(state, action, params)
    jax.block_until_ready(q)
    assert q.shape == (B, 1), q.shape

    ref = reference_forward(state, action, params)
    assert jnp.allclose(q, ref, atol=1e-3, rtol=1e-3), (q, ref)

    print("KERNEL_OK")
</pallas_src>

<mosaic_0001>
module attributes {stable_mosaic.version = 11 : i64} {
  func.func @critic_kernel(%arg0: i32, %arg1: memref<8x16xf32, #tpu.memory_space<vmem>>, %arg2: memref<8x8xf32, #tpu.memory_space<vmem>>, %arg3: memref<16x32xbf16, #tpu.memory_space<vmem>>, %arg4: memref<1x32xf32, #tpu.memory_space<vmem>>, %arg5: memref<32x16xbf16, #tpu.memory_space<vmem>>, %arg6: memref<8x16xbf16, #tpu.memory_space<vmem>>, %arg7: memref<1x16xf32, #tpu.memory_space<vmem>>, %arg8: memref<1x16xf32, #tpu.memory_space<vmem>>, %arg9: memref<1xf32, #tpu.memory_space<smem>>, %arg10: memref<8x1xf32, #tpu.memory_space<vmem>>) attributes {dimension_semantics = [#tpu.dimension_semantics<parallel>], iteration_bounds = array<i64: 1>, scalar_prefetch = 0 : i64, scratch_operands = 0 : i64, tpu.core_type = #tpu.core_type<tc>, window_params = [{transform_indices = @transform_0, window_bounds = array<i64: 8, 16>}, {transform_indices = @transform_1, window_bounds = array<i64: 8, 8>}, {pipeline_mode = #tpu.pipeline_mode<synchronous>, transform_indices = @transform_2, window_bounds = array<i64: 16, 32>}, {pipeline_mode = #tpu.pipeline_mode<synchronous>, transform_indices = @transform_3, window_bounds = array<i64: 1, 32>}, {pipeline_mode = #tpu.pipeline_mode<synchronous>, transform_indices = @transform_4, window_bounds = array<i64: 32, 16>}, {pipeline_mode = #tpu.pipeline_mode<synchronous>, transform_indices = @transform_5, window_bounds = array<i64: 8, 16>}, {pipeline_mode = #tpu.pipeline_mode<synchronous>, transform_indices = @transform_6, window_bounds = array<i64: 1, 16>}, {pipeline_mode = #tpu.pipeline_mode<synchronous>, transform_indices = @transform_7, window_bounds = array<i64: 1, 16>}, {transform_indices = @transform_8, window_bounds = array<i64: 1>}, {transform_indices = @transform_9, window_bounds = array<i64: 8, 1>}]} {
    %c0 = arith.constant 0 : index
    %c0_0 = arith.constant 0 : index
    %0 = vector.load %arg1[%c0, %c0_0] : memref<8x16xf32, #tpu.memory_space<vmem>>, vector<8x16xf32>
    %1 = arith.truncf %0 : vector<8x16xf32> to vector<8x16xbf16>
    %c0_1 = arith.constant 0 : index
    %c0_2 = arith.constant 0 : index
    %2 = vector.load %arg2[%c0_1, %c0_2] : memref<8x8xf32, #tpu.memory_space<vmem>>, vector<8x8xf32>
    %3 = arith.truncf %2 : vector<8x8xf32> to vector<8x8xbf16>
    %c0_3 = arith.constant 0 : index
    %c0_4 = arith.constant 0 : index
    %4 = vector.load %arg3[%c0_3, %c0_4] : memref<16x32xbf16, #tpu.memory_space<vmem>>, vector<16x32xbf16>
    %cst = arith.constant dense<0.000000e+00> : vector<8x32xf32>
    %5 = tpu.matmul %1, %4, %cst {dimension_numbers = #tpu.dot_dimension_numbers<[1], [0], [0], [1], [0, 0, 1, 1], [], []>} : vector<8x16xbf16>, vector<16x32xbf16>, vector<8x32xf32> -> vector<8x32xf32>
    %c0_5 = arith.constant 0 : index
    %c0_6 = arith.constant 0 : index
    %6 = vector.load %arg4[%c0_5, %c0_6] : memref<1x32xf32, #tpu.memory_space<vmem>>, vector<1x32xf32>
    %7 = vector.broadcast %6 : vector<1x32xf32> to vector<8x32xf32>
    %8 = arith.addf %5, %7 : vector<8x32xf32>
    %cst_7 = arith.constant 0.000000e+00 : f32
    %9 = vector.broadcast %cst_7 : f32 to vector<8x32xf32>
    %10 = arith.maximumf %8, %9 : vector<8x32xf32>
    %11 = arith.truncf %10 : vector<8x32xf32> to vector<8x32xbf16>
    %c0_8 = arith.constant 0 : index
    %c0_9 = arith.constant 0 : index
    %12 = vector.load %arg5[%c0_8, %c0_9] : memref<32x16xbf16, #tpu.memory_space<vmem>>, vector<32x16xbf16>
    %cst_10 = arith.constant dense<0.000000e+00> : vector<8x16xf32>
    %13 = tpu.matmul %11, %12, %cst_10 {dimension_numbers = #tpu.dot_dimension_numbers<[1], [0], [0], [1], [0, 0, 1, 1], [], []>} : vector<8x32xbf16>, vector<32x16xbf16>, vector<8x16xf32> -> vector<8x16xf32>
    %c0_11 = arith.constant 0 : index
    %c0_12 = arith.constant 0 : index
    %14 = vector.load %arg6[%c0_11, %c0_12] : memref<8x16xbf16, #tpu.memory_space<vmem>>, vector<8x16xbf16>
    %cst_13 = arith.constant dense<0.000000e+00> : vector<8x16xf32>
    %15 = tpu.matmul %3, %14, %cst_13 {dimension_numbers = #tpu.dot_dimension_numbers<[1], [0], [0], [1], [0, 0, 1, 1], [], []>} : vector<8x8xbf16>, vector<8x16xbf16>, vector<8x16xf32> -> vector<8x16xf32>
    %16 = arith.addf %13, %15 : vector<8x16xf32>
    %c0_14 = arith.constant 0 : index
    %c0_15 = arith.constant 0 : index
    %17 = vector.load %arg7[%c0_14, %c0_15] : memref<1x16xf32, #tpu.memory_space<vmem>>, vector<1x16xf32>
    %18 = vector.broadcast %17 : vector<1x16xf32> to vector<8x16xf32>
    %19 = arith.addf %16, %18 : vector<8x16xf32>
    %cst_16 = arith.constant 0.000000e+00 : f32
    %20 = vector.broadcast %cst_16 : f32 to vector<8x16xf32>
    %21 = arith.maximumf %19, %20 : vector<8x16xf32>
    %c0_17 = arith.constant 0 : index
    %c0_18 = arith.constant 0 : index
    %22 = vector.load %arg8[%c0_17, %c0_18] : memref<1x16xf32, #tpu.memory_space<vmem>>, vector<1x16xf32>
    %23 = vector.broadcast %22 : vector<1x16xf32> to vector<8x16xf32>
    %24 = arith.mulf %21, %23 : vector<8x16xf32>
    %cst_19 = arith.constant dense<0.000000e+00> : vector<8xf32>
    %25 = vector.multi_reduction <add>, %24, %cst_19 [1] : vector<8x16xf32> to vector<8xf32>
    %26 = vector.shape_cast %25 : vector<8xf32> to vector<8x1xf32>
    %c0_20 = arith.constant 0 : index
    %27 = memref.load %arg9[%c0_20] : memref<1xf32, #tpu.memory_space<smem>>
    %28 = vector.broadcast %27 : f32 to vector<8x1xf32>
    %29 = arith.addf %26, %28 : vector<8x1xf32>
    %c0_21 = arith.constant 0 : index
    %c0_22 = arith.constant 0 : index
    %30 = vector.load %arg10[%c0_21, %c0_22] : memref<8x1xf32, #tpu.memory_space<vmem>>, vector<8x1xf32>
    tpu.vector_store %arg10[%c0_21, %c0_22], %29 {strides = array<i32>} : memref<8x1xf32, #tpu.memory_space<vmem>>, vector<8x1xf32>,
    return
  }
  func.func @transform_0(%arg0: i32) -> (i32, i32) {
    %c0_i32 = arith.constant 0 : i32
    %c0_i32_0 = arith.constant 0 : i32
    return %arg0, %c0_i32 : i32, i32
  }
  func.func @transform_1(%arg0: i32) -> (i32, i32) {
    %c0_i32 = arith.constant 0 : i32
    %c0_i32_0 = arith.constant 0 : i32
    return %arg0, %c0_i32 : i32, i32
  }
  func.func @transform_2(%arg0: i32) -> (i32, i32) {
    %c0_i32 = arith.constant 0 : i32
    %c0_i32_0 = arith.constant 0 : i32
    %c0_i32_1 = arith.constant 0 : i32
    return %c0_i32, %c0_i32_0 : i32, i32
  }
  func.func @transform_3(%arg0: i32) -> (i32, i32) {
    %c0_i32 = arith.constant 0 : i32
    %c0_i32_0 = arith.constant 0 : i32
    %c0_i32_1 = arith.constant 0 : i32
    return %c0_i32, %c0_i32_0 : i32, i32
  }
  func.func @transform_4(%arg0: i32) -> (i32, i32) {
    %c0_i32 = arith.constant 0 : i32
    %c0_i32_0 = arith.constant 0 : i32
    %c0_i32_1 = arith.constant 0 : i32
    return %c0_i32, %c0_i32_0 : i32, i32
  }
  func.func @transform_5(%arg0: i32) -> (i32, i32) {
    %c0_i32 = arith.constant 0 : i32
    %c0_i32_0 = arith.constant 0 : i32
    %c0_i32_1 = arith.constant 0 : i32
    return %c0_i32, %c0_i32_0 : i32, i32
  }
  func.func @transform_6(%arg0: i32) -> (i32, i32) {
    %c0_i32 = arith.constant 0 : i32
    %c0_i32_0 = arith.constant 0 : i32
    %c0_i32_1 = arith.constant 0 : i32
    return %c0_i32, %c0_i32_0 : i32, i32
  }
  func.func @transform_7(%arg0: i32) -> (i32, i32) {
    %c0_i32 = arith.constant 0 : i32
    %c0_i32_0 = arith.constant 0 : i32
    %c0_i32_1 = arith.constant 0 : i32
    return %c0_i32, %c0_i32_0 : i32, i32
  }
  func.func @transform_8(%arg0: i32) -> i32 {
    %c0_i32 = arith.constant 0 : i32
    %c0_i32_0 = arith.constant 0 : i32
    return %c0_i32 : i32
  }
  func.func @transform_9(%arg0: i32) -> (i32, i32) {
    %c0_i32 = arith.constant 0 : i32
    %c0_i32_0 = arith.constant 0 : i32
    return %arg0, %c0_i32 : i32, i32
  }
}

</mosaic_0001>

<llo_original>
// kernel: critic_forward.1
$region0: #{critic_forward.1}
  #allocation0 [shape = 'u32[]', space=smem, size = 0x4, offset = 0x4, fixed_abs, tag = 'smem constant byte address 0x4 - core index']
  #allocation1 [shape = 'u32[144,128]{1,0:T(1,128)}', space=vmem, size = 0x12000, scoped, tag = 'internal scratch']
  #allocation2 [shape = 'f32[1]{0:T(128)S(6)}', space=smem, size = 0x200, scoped, tag = 'scoped memory for critic_forward.1']
  %s0 = inlined_call_operand.vmem [shape: f32[8,16], index: 0, kind: input, shape index: {}]
  %s1 = inlined_call_operand.vmem [shape: f32[8,8], index: 1, kind: input, shape index: {}]
  %s2 = inlined_call_operand.vmem [shape: bf16[16,32], index: 2, kind: input, shape index: {}]
  %s3 = inlined_call_operand.vmem [shape: f32[1,32], index: 3, kind: input, shape index: {}]
  %s4 = inlined_call_operand.vmem [shape: bf16[32,16], index: 4, kind: input, shape index: {}]
  %s5 = inlined_call_operand.vmem [shape: bf16[8,16], index: 5, kind: input, shape index: {}]
  %s6 = inlined_call_operand.vmem [shape: f32[1,16], index: 6, kind: input, shape index: {}]
  %s7 = inlined_call_operand.vmem [shape: f32[1,16], index: 7, kind: input, shape index: {}]
  %s8 = inlined_call_operand.<no memory space> [shape: f32[1], index: 8, kind: input, shape index: {}]
  %s9 = inlined_call_operand.vmem [shape: f32[8,1], index: 9, kind: output, shape index: {}]
  %s10 = sld [smem:[#allocation0]]
  $region46: #{critic_forward.1} parent=0
    _
  %s12 = ssub.s32 1, %s10
  %s13 = scalar_select 0, %s12, %s10
  %14 = sst [smem:[#allocation2]] %s8
  // Predicated region
  $region2: #{critic_forward.1} parent=0 // pred_check
    _
  $region3: #{critic_forward.1} parent=0 // pred_check_branch
    %16 = sbr.rel (0) target = $region5
  $region4: #{critic_forward.1} parent=0 // pred_region
    _
  $region5: #{critic_forward.1} parent=0 // pred_fallthru
    _
  // Predicated region
  $region6: #{critic_forward.1} parent=0 // pred_check
    _
  $region7: #{critic_forward.1} parent=0 // pred_check_branch
    %18 = sbr.rel (0) target = $region9
  $region8: #{critic_forward.1} parent=0 // pred_region
    _
  $region9: #{critic_forward.1} parent=0 // pred_fallthru
    _
  // Predicated region
  $region10: #{critic_forward.1} parent=0 // pred_check
    _
  $region11: #{critic_forward.1} parent=0 // pred_check_branch
    %20 = sbr.rel (0) target = $region13
  $region12: #{critic_forward.1} parent=0 // pred_region
    _
  $region13: #{critic_forward.1} parent=0 // pred_fallthru
    _
  // Predicated region
  $region14: #{critic_forward.1} parent=0 // pred_check
    _
  $region15: #{critic_forward.1} parent=0 // pred_check_branch
    %22 = sbr.rel (0) target = $region17
  $region16: #{critic_forward.1} parent=0 // pred_region
    _
  $region17: #{critic_forward.1} parent=0 // pred_fallthru
    _
  // Predicated region
  $region18: #{critic_forward.1} parent=0 // pred_check
    _
  $region19: #{critic_forward.1} parent=0 // pred_check_branch
    %24 = sbr.rel (0) target = $region21
  $region20: #{critic_forward.1} parent=0 // pred_region
    _
  $region21: #{critic_forward.1} parent=0 // pred_fallthru
    _
  // Predicated region
  $region22: #{critic_forward.1} parent=0 // pred_check
    _
  $region23: #{critic_forward.1} parent=0 // pred_check_branch
    %26 = sbr.rel (0) target = $region25
  $region24: #{critic_forward.1} parent=0 // pred_region
    _
  $region25: #{critic_forward.1} parent=0 // pred_fallthru
    _
  // Predicated region
  $region26: #{critic_forward.1} parent=0 // pred_check
    _
  $region27: #{critic_forward.1} parent=0 // pred_check_branch
    %28 = sbr.rel (0) target = $region29
  $region28: #{critic_forward.1} parent=0 // pred_region
    _
  $region29: #{critic_forward.1} parent=0 // pred_fallthru
    _
  // Predicated region
  $region30: #{critic_forward.1} parent=0 // pred_check
    _
  $region31: #{critic_forward.1} parent=0 // pred_check_branch
    %30 = sbr.rel (0) target = $region33
  $region32: #{critic_forward.1} parent=0 // pred_region
    _
  $region33: #{critic_forward.1} parent=0 // pred_fallthru
    _
  // Predicated region
  $region34: #{critic_forward.1} parent=0 // pred_check
    _
  $region35: #{critic_forward.1} parent=0 // pred_check_branch
    %32 = sbr.rel (0) target = $region37
  $region36: #{critic_forward.1} parent=0 // pred_region
    _
  $region37: #{critic_forward.1} parent=0 // pred_fallthru
    _
  %v34 = vld [vmem:[%s0] sm:$0xff]
  %v35 = vpack.c.bf16 %v34, %v34
  %v36 = vld [vmem:[%s1] sm:$0xff]
  %v37 = vpack.c.bf16 %v36, %v36
  %v38 = vld [vmem:[%s2] sm:$0xf]
  %v39 = vld [vmem:[%s2 + $0x4] sm:$0xf]
  %v40 = vld [vmem:[%s3] sm:$0x1]
  %v42 = vlaneseq
  %v43 = vshrl.u32 %v42, 7
  %v44 = vsub.s32 0, %v43
  %v45 = vrot.slane %v40, %v44
  %v49 = vunpack.c.l.b16 %v38
  %v50 = vunpack.c.l.b16 %v39
  %v51 = vpack.c.b16 %v50, %v49
  %vm53 = vcmask 130048
  %v55 = vsel %vm53, %v35, 0
  %57 = vmatprep.subr.bf16.mxu0 0
  %58 = vmatpush1.bf16.msra.mxu0 0
  %59 = vmatprep.subr.bf16.mxu0 0
  %60 = vmatpush1.bf16.msra.mxu0 0
  %61 = vmatprep.subr.bf16.mxu0 0
  %62 = vmatpush1.bf16.msra.mxu0 0
  %63 = vmatprep.subr.bf16.mxu0 0
  %64 = vmatpush1.bf16.msra.mxu0 0
  %65 = vmatprep.subr.bf16.mxu0 0
  %66 = vmatpush1.bf16.msra.mxu0 0
  %67 = vmatprep.subr.bf16.mxu0 0
  %68 = vmatpush1.bf16.msra.mxu0 0
  %69 = vmatprep.subr.bf16.mxu0 0
  %70 = vmatpush1.bf16.msra.mxu0 0
  %71 = vmatprep.subr.bf16.mxu0 0
  %72 = vmatpush1.bf16.msra.mxu0 %v51
  %73 = vmatprep.subr.bf16.mxu0 0
  %74 = vmatpush2.bf16.msra.mxu0 0
  %75 = vmatprep.subr.bf16.mxu0 0
  %76 = vmatpush2.bf16.msra.mxu0 0
  %77 = vmatprep.subr.bf16.mxu0 0
  %78 = vmatpush2.bf16.msra.mxu0 0
  %79 = vmatprep.subr.bf16.mxu0 0
  %80 = vmatpush2.bf16.msra.mxu0 0
  %81 = vmatprep.subr.bf16.mxu0 0
  %82 = vmatpush2.bf16.msra.mxu0 0
  %83 = vmatprep.subr.bf16.mxu0 0
  %84 = vmatpush2.bf16.msra.mxu0 0
  %85 = vmatprep.subr.bf16.mxu0 0
  %86 = vmatpush2.bf16.msra.mxu0 0
  %87 = vmatprep.subr.bf16.mxu0 0
  %88 = vmatpush2.bf16.msra.mxu0 0
  %89 = vmatprep.mubr.bf16.mxu0 0
  %90 = vmatmul.mubr.bf16.gmra.mxu0 %v55
  %v91 = vpop.f32.mrf.mxu0
  %v92 = vadd.f32 %v45, %v91
  %v93 = vpop.f32.mrf.mxu0
  %v94 = vpop.f32.mrf.mxu0
  %v95 = vpop.f32.mrf.mxu0
  %96 = vdwg.mxu0
  %v97 = vmax.f32 %v92, 0.0
  %v98 = vpack.c.bf16 %v97, %v97
  %v99 = vld [vmem:[%s4] sm:$0xf]
  %v100 = vld [vmem:[%s4 + $0x4] sm:$0xf]
  %v101 = vld [vmem:[%s4 + $0x8] sm:$0xf]
  %v102 = vld [vmem:[%s4 + $0xc] sm:$0xf]
  %v103 = vld [vmem:[%s5] sm:$0xf]
  %vm104 = vcmask 64512
  %v106 = vsel %vm104, %v37, 0
  %vm108 = vcmask 1043456
  %v110 = vsel %vm108, %v103, 0
  %112 = vmatprep.subr.bf16.mxu0 0
  %113 = vmatpush1.bf16.msra.mxu0 0
  %114 = vmatprep.subr.bf16.mxu0 0
  %115 = vmatpush1.bf16.msra.mxu0 0
  %116 = vmatprep.subr.bf16.mxu0 0
  %117 = vmatpush1.bf16.msra.mxu0 0
  %118 = vmatprep.subr.bf16.mxu0 0
  %119 = vmatpush1.bf16.msra.mxu0 0
  %120 = vmatprep.subr.bf16.mxu0 0
  %121 = vmatpush1.bf16.msra.mxu0 0
  %122 = vmatprep.subr.bf16.mxu0 0
  %123 = vmatpush1.bf16.msra.mxu0 0
  %124 = vmatprep.subr.bf16.mxu0 0
  %125 = vmatpush1.bf16.msra.mxu0 0
  %126 = vmatprep.subr.bf16.mxu0 0
  %127 = vmatpush1.bf16.msra.mxu0 %v110
  %128 = vmatprep.subr.bf16.mxu0 0
  %129 = vmatpush2.bf16.msra.mxu0 0
  %130 = vmatprep.subr.bf16.mxu0 0
  %131 = vmatpush2.bf16.msra.mxu0 0
  %132 = vmatprep.subr.bf16.mxu0 0
  %133 = vmatpush2.bf16.msra.mxu0 0
  %134 = vmatprep.subr.bf16.mxu0 0
  %135 = vmatpush2.bf16.msra.mxu0 0
  %136 = vmatprep.subr.bf16.mxu0 0
  %137 = vmatpush2.bf16.msra.mxu0 0
  %138 = vmatprep.subr.bf16.mxu0 0
  %139 = vmatpush2.bf16.msra.mxu0 0
  %140 = vmatprep.subr.bf16.mxu0 0
  %141 = vmatpush2.bf16.msra.mxu0 0
  %142 = vmatprep.subr.bf16.mxu0 0
  %143 = vmatpush2.bf16.msra.mxu0 0
  %144 = vmatprep.mubr.bf16.mxu0 0
  %145 = vmatmul.mubr.bf16.gmra.mxu0 %v106
  %v146 = vpop.f32.mrf.mxu0
  %v147 = vadd.f32 0.0, %v146
  %v148 = vpop.f32.mrf.mxu0
  %v149 = vpop.f32.mrf.mxu0
  %v150 = vpop.f32.mrf.mxu0
  %151 = vdwg.mxu0
  %v156 = vunpack.c.l.b16 %v99
  %v157 = vunpack.c.l.b16 %v100
  %v158 = vunpack.c.l.b16 %v101
  %v159 = vunpack.c.l.b16 %v102
  %v160 = vpack.c.b16 %v157, %v156
  %v161 = vpack.c.b16 %v159, %v158
  %vm164 = vcmask 261120
  %v166 = vsel %vm164, %v98, 0
  %168 = vmatprep.subr.bf16.mxu0 0
  %169 = vmatpush1.bf16.msra.mxu0 0
  %170 = vmatprep.subr.bf16.mxu0 0
  %171 = vmatpush1.bf16.msra.mxu0 0
  %172 = vmatprep.subr.bf16.mxu0 0
  %173 = vmatpush1.bf16.msra.mxu0 0
  %174 = vmatprep.subr.bf16.mxu0 0
  %175 = vmatpush1.bf16.msra.mxu0 0
  %176 = vmatprep.subr.bf16.mxu0 0
  %177 = vmatpush1.bf16.msra.mxu0 0
  %178 = vmatprep.subr.bf16.mxu0 0
  %179 = vmatpush1.bf16.msra.mxu0 0
  %180 = vmatprep.subr.bf16.mxu0 0
  %181 = vmatpush1.bf16.msra.mxu0 %v161
  %182 = vmatprep.subr.bf16.mxu0 0
  %183 = vmatpush1.bf16.msra.mxu0 %v160
  %184 = vmatprep.subr.bf16.mxu0 0
  %185 = vmatpush2.bf16.msra.mxu0 0
  %186 = vmatprep.subr.bf16.mxu0 0
  %187 = vmatpush2.bf16.msra.mxu0 0
  %188 = vmatprep.subr.bf16.mxu0 0
  %189 = vmatpush2.bf16.msra.mxu0 0
  %190 = vmatprep.subr.bf16.mxu0 0
  %191 = vmatpush2.bf16.msra.mxu0 0
  %192 = vmatprep.subr.bf16.mxu0 0
  %193 = vmatpush2.bf16.msra.mxu0 0
  %194 = vmatprep.subr.bf16.mxu0 0
  %195 = vmatpush2.bf16.msra.mxu0 0
  %196 = vmatprep.subr.bf16.mxu0 0
  %197 = vmatpush2.bf16.msra.mxu0 0
  %198 = vmatprep.subr.bf16.mxu0 0
  %199 = vmatpush2.bf16.msra.mxu0 0
  %200 = vmatprep.mubr.bf16.mxu0 0
  %201 = vmatmul.mubr.bf16.gmra.mxu0 %v166
  %v202 = vpop.f32.mrf.mxu0
  %v203 = vadd.f32 %v147, %v202
  %v204 = vpop.f32.mrf.mxu0
  %v205 = vpop.f32.mrf.mxu0
  %v206 = vpop.f32.mrf.mxu0
  %207 = vdwg.mxu0
  %v208 = vld [vmem:[%s6] sm:$0x1]
  %v210 = vlaneseq
  %v211 = vshrl.u32 %v210, 7
  %v212 = vsub.s32 0, %v211
  %v213 = vrot.slane %v208, %v212
  %v215 = vadd.f32 %v203, %v213
  %v216 = vmax.f32 %v215, 0.0
  %v217 = vld [vmem:[%s7] sm:$0x1]
  %v219 = vlaneseq
  %v220 = vshrl.u32 %v219, 7
  %v221 = vsub.s32 0, %v220
  %v222 = vrot.slane %v217, %v221
  %v224 = vmul.f32 %v216, %v222
  %v225 = vsel %vm53, %v224, 0.0
  %226 = vadd.xlane.f32.xlu0 %v225
  %v227 = vpop.xlane.xlu0 %226
  %s228 = sld [smem:[#allocation2]]
  %v229 = vstv %s228
  %v230 = vadd.f32 %v227, %v229
  %vm231 = vcmask 7168
  %232 = vst.msk [vmem:[%s9] sm:$0xff] %vm231, %v230
  // Predicated region
  $region38: #{critic_forward.1} parent=0 // pred_check
    _
  $region39: #{critic_forward.1} parent=0 // pred_check_branch
    %234 = sbr.rel (0) target = $region41
  $region40: #{critic_forward.1} parent=0 // pred_region
    _
  $region41: #{critic_forward.1} parent=0 // pred_fallthru
    _
  // Predicated region
  $region42: #{critic_forward.1} parent=0 // pred_check
    _
  $region43: #{critic_forward.1} parent=0 // pred_check_branch
    %236 = sbr.rel (0) target = $region45
  $region44: #{critic_forward.1} parent=0 // pred_region
    _
  $region45: #{critic_forward.1} parent=0 // pred_fallthru
    _

</llo_original>
